<compile_context>
chip_gen: v5e
topology: v5e:2x2
jax: 0.10.0
libtpu: 0.0.40
codegen_flags: <defaults>
</compile_context>

<pallas_src>
import functools
from typing import NamedTuple

import jax
import jax.numpy as jnp
from jax.experimental import pallas as pl
from jax.experimental.pallas import tpu as pltpu

_LANE = 128


def _cdiv(a, b):
    return -(-a // b)


def _round_up(a, b):
    return _cdiv(a, b) * b


# ----------------------------------------------------------------------------
# One-time capability / hardware probes
# ----------------------------------------------------------------------------

@functools.lru_cache(maxsize=1)
def _vmem_budget():
    """Per-TensorCore VMEM budget (bytes), generation-aware with headroom."""
    cap = None
    try:
        info = pltpu.get_tpu_info()
        cap = int(getattr(info, "vmem_capacity_bytes", 0)) or None
    except Exception:
        cap = None
    if cap is None or cap <= 0:
        cap = 64 << 20  # conservative fallback (v7x-sized)
    # Leave headroom for Mosaic internal scratch and the double-buffered
    # activation tiles: ~82% of physical, at least 10 MiB free.
    return int(min(cap * 0.82, cap - (10 << 20)))


@functools.lru_cache(maxsize=1)
def _buffered_one_supported():
    """One-time probe: does this JAX/Mosaic accept pipeline_mode=Buffered(1)?"""
    if not hasattr(pl, "Buffered"):
        return False

    def k(c_ref, x_ref, o_ref):
        o_ref[...] = x_ref[...] + c_ref[...]

    try:
        f = pl.pallas_call(
            k,
            out_shape=jax.ShapeDtypeStruct((8, _LANE), jnp.float32),
            grid=(1,),
            in_specs=[
                pl.BlockSpec((8, _LANE), lambda i: (0, 0),
                             pipeline_mode=pl.Buffered(1)),
                pl.BlockSpec((8, _LANE), lambda i: (i, 0)),
            ],
            out_specs=pl.BlockSpec((8, _LANE), lambda i: (i, 0)),
        )
        jax.block_until_ready(
            f(jnp.zeros((8, _LANE), jnp.float32),
              jnp.ones((8, _LANE), jnp.float32)))
        return True
    except Exception:
        return False


# ----------------------------------------------------------------------------
# Kernel body
# ----------------------------------------------------------------------------

def ffn_kernel(x_ref, gamma_ref, beta_ref, w1_ref, b1_ref, w2_ref, b2_ref,
               o_ref, acc_ref, xn_ref, *, eps, dim):
    j = pl.program_id(1)  # hidden-tile step (reduction axis, "arbitrary")

    @pl.when(j == 0)
    def _():
        # LayerNorm over the real (unpadded) feature width; result cached in
        # the matmul input dtype so it is reused across hidden tiles.
        # (Stats are f32; padded columns carry gamma=beta=0 so they stay 0.)
        xf = x_ref[...].astype(jnp.float32)                       # (TM, Dp)
        inv_d = 1.0 / float(dim)
        mean = jnp.sum(xf, axis=-1, keepdims=True) * inv_d        # (TM, 1)
        xc = xf - mean
        if xf.shape[-1] != dim:
            col = jax.lax.broadcasted_iota(jnp.int32, xc.shape, 1)
            xc = jnp.where(col < dim, xc, 0.0)                    # mask pads out of variance
        var = jnp.sum(xc * xc, axis=-1, keepdims=True) * inv_d
        inv = jax.lax.rsqrt(var + eps)
        gamma = gamma_ref[...].astype(jnp.float32)                # (1, Dp)
        beta = beta_ref[...].astype(jnp.float32)                  # (1, Dp)
        xn_ref[...] = (xc * inv * gamma + beta).astype(xn_ref.dtype)
        acc_ref[...] = jnp.zeros_like(acc_ref)

    # ---- Linear(dim -> hidden tile) + bias, SiLU ----
    h = jnp.dot(xn_ref[...], w1_ref[...],
                preferred_element_type=jnp.float32)               # (TM, TH), f32 accum
    h = h + b1_ref[...].astype(jnp.float32)
    h = h * jax.nn.sigmoid(h)

    # (Dropout: identity in eval mode)
    # TODO(synk): training-mode dropout (stateful PRNG masks) not implemented.

    # ---- partial Linear(hidden tile -> dim), accumulate in f32 ----
    acc_ref[...] += jnp.dot(h.astype(w2_ref.dtype), w2_ref[...],
                            preferred_element_type=jnp.float32)   # (TM, Dp)

    @pl.when(j == pl.num_programs(1) - 1)
    def _():
        y = acc_ref[...] + b2_ref[...].astype(jnp.float32)
        # (second Dropout: identity in eval mode)
        o_ref[...] = y.astype(o_ref.dtype)


# ----------------------------------------------------------------------------
# Tile sizing
# ----------------------------------------------------------------------------

def _tile_bytes(tm, dim_p, th, wbytes, xbytes):
    io = 2 * 2 * tm * dim_p * xbytes                  # double-buffered x + out tiles
    scratch = tm * dim_p * 4 + tm * dim_p * wbytes    # acc (f32) + cached xn
    temps = 2 * tm * th * 4 + 2 * tm * dim_p * 4      # h / y f32 temporaries
    return io + scratch + temps


def _fixed_bytes(dim_p, th, wbytes, weight_buffers):
    weights = 2 * dim_p * th * wbytes                 # w1 + w2 slabs (one copy)
    vectors = (3 * dim_p + 2 * th) * 4 * 2            # gamma/beta/b2 + b1 (tiny)
    return weight_buffers * weights + vectors


def _pick_hidden_tile(dim_p, hidden, wbytes, budget):
    """Returns (th, hidden_p, resident)."""
    hidden_p_full = _round_up(hidden, _LANE)
    w_budget = int(budget * 0.6)
    if 2 * dim_p * hidden_p_full * wbytes <= w_budget:
        return hidden_p_full, hidden_p_full, True
    # Weights can't stay resident: tile the hidden axis; the w1/w2 slabs then
    # double-buffer along the ("arbitrary") hidden grid axis.
    th = (w_budget // (2 * 2 * dim_p * wbytes)) // _LANE * _LANE
    th = max(_LANE, min(th, hidden_p_full))
    hidden_p = _round_up(hidden, th)
    return th, hidden_p, False


def _pick_row_tile(rows, dim_p, th, wbytes, xbytes, avail, sub):
    # Prefer MXU-aligned tiles (multiples of 128, up to 512); the fixed weight
    # residency has already been removed from `avail`, so only genuinely
    # tm-dependent bytes shrink the tile.
    tm = 512
    while tm > 128 and _tile_bytes(tm, dim_p, th, wbytes, xbytes) > avail:
        tm -= 128
    while tm > sub and _tile_bytes(tm, dim_p, th, wbytes, xbytes) > avail:
        tm -= sub
    tm = max(tm, sub)

    rows_cap = _round_up(rows, sub)
    if tm > rows_cap:
        tm = rows_cap
    if tm >= 128:
        tm -= tm % 128          # MXU M granularity
    else:
        tm = _round_up(tm, sub)  # sublane packing granularity

    # Give the row grid >= 2 steps when there are enough rows (v7x shards the
    # "parallel" axis across its 2 TensorCores).
    if _cdiv(rows, tm) < 2 and rows > sub:
        tm = max(sub, _round_up(_cdiv(rows_cap, 2), sub))
        if tm >= 128:
            tm -= tm % 128
    return tm


# ----------------------------------------------------------------------------
# Parameter preparation (hoist padding out of the per-call path) and apply
# ----------------------------------------------------------------------------

class FFNParams(NamedTuple):
    gamma: jax.Array   # (1, dim_p)
    beta: jax.Array    # (1, dim_p)
    w1: jax.Array      # (dim_p, hidden_p)
    b1: jax.Array      # (1, hidden_p)
    w2: jax.Array      # (hidden_p, dim_p)
    b2: jax.Array      # (1, dim_p)
    dim: int
    hidden: int
    th: int            # hidden tile width
    resident: bool     # weights fully resident (single hidden tile)
    eps: float


def ffn_prepare(gamma, beta, w1, b1, w2, b2, *, eps=1e-5, weights_dtype=None):
    """Pad/cast parameters once; cache the result and reuse it across calls."""
    dim, hidden = w1.shape
    dim_p = _round_up(dim, _LANE)
    if weights_dtype is not None:
        # Optional pre-cast (e.g. bf16) for MXU peak; changes numerics.
        w1 = w1.astype(weights_dtype)
        w2 = w2.astype(weights_dtype)
    wbytes = jnp.dtype(w1.dtype).itemsize
    th, hidden_p, resident = _pick_hidden_tile(dim_p, hidden, wbytes, _vmem_budget())

    def pad1(v, n):
        return (jnp.pad(v, (0, n - v.shape[0])) if n != v.shape[0] else v).reshape(1, n)

    def pad2(m, r, c):
        if m.shape == (r, c):
            return m
        return jnp.pad(m, ((0, r - m.shape[0]), (0, c - m.shape[1])))

    return FFNParams(
        gamma=pad1(gamma, dim_p), beta=pad1(beta, dim_p),
        w1=pad2(w1, dim_p, hidden_p), b1=pad1(b1, hidden_p),
        w2=pad2(w2, hidden_p, dim_p), b2=pad1(b2, dim_p),
        dim=int(dim), hidden=int(hidden), th=int(th),
        resident=bool(resident), eps=float(eps))


def ffn_apply(params: FFNParams, x):
    """x: (..., dim). Returns same shape/dtype. Dropout is eval-mode identity."""
    orig_shape = x.shape
    dim = params.dim
    dim_p = params.gamma.shape[-1]
    hidden_p = params.w1.shape[1]
    th = params.th
    n_h = hidden_p // th

    x2 = x.reshape(-1, dim)
    rows = x2.shape[0]
    if dim_p != dim:
        # Lane-dense feature padding (only when dim is not 128-aligned).
        x2 = jnp.pad(x2, ((0, 0), (0, dim_p - dim)))

    xbytes = jnp.dtype(x.dtype).itemsize
    wbytes = jnp.dtype(params.w1.dtype).itemsize
    sub = max(8, 32 // xbytes)                 # 8 f32 / 16 bf16 / 32 int8

    buffered_one = _buffered_one_supported()
    budget = _vmem_budget()
    weight_buffers = 1 if (params.resident and buffered_one) else 2
    avail = max(budget - _fixed_bytes(dim_p, th, wbytes, weight_buffers), 2 << 20)
    tm = _pick_row_tile(rows, dim_p, th, wbytes, xbytes, avail, sub)
    n_rows = _cdiv(rows, tm)                   # partial last block handled by the grid

    def const_spec(shape):
        # Grid-constant blocks: single-buffer so resident weights don't pay 2x VMEM.
        if buffered_one:
            return pl.BlockSpec(shape, lambda i, j: (0, 0),
                                pipeline_mode=pl.Buffered(1))
        return pl.BlockSpec(shape, lambda i, j: (0, 0))

    if params.resident:
        w1_spec = const_spec((dim_p, th))
        b1_spec = const_spec((1, th))
        w2_spec = const_spec((th, dim_p))
    else:
        w1_spec = pl.BlockSpec((dim_p, th), lambda i, j: (0, j))
        b1_spec = pl.BlockSpec((1, th), lambda i, j: (0, j))
        w2_spec = pl.BlockSpec((th, dim_p), lambda i, j: (j, 0))

    kernel = functools.partial(ffn_kernel, eps=params.eps, dim=dim)

    out = pl.pallas_call(
        kernel,
        out_shape=jax.ShapeDtypeStruct((rows, dim_p), x.dtype),
        grid_spec=pltpu.PrefetchScalarGridSpec(
            num_scalar_prefetch=0,
            grid=(n_rows, n_h),
            in_specs=[
                pl.BlockSpec((tm, dim_p), lambda i, j: (i, 0)),   # x tile
                const_spec((1, dim_p)),                           # gamma
                const_spec((1, dim_p)),                           # beta
                w1_spec,                                          # w1
                b1_spec,                                          # b1
                w2_spec,                                          # w2
                const_spec((1, dim_p)),                           # b2
            ],
            out_specs=pl.BlockSpec((tm, dim_p), lambda i, j: (i, 0)),
            scratch_shapes=[
                pltpu.VMEM((tm, dim_p), jnp.float32),             # acc
                pltpu.VMEM((tm, dim_p), params.w1.dtype),         # cached xn
            ],
        ),
        compiler_params=pltpu.CompilerParams(
            dimension_semantics=("parallel", "arbitrary"),
            vmem_limit_bytes=int(budget)),
    )(x2, params.gamma, params.beta, params.w1, params.b1, params.w2, params.b2)

    if dim_p != dim:
        out = out[:, :dim]
    return out.reshape(orig_shape)


def ffn_pallas(x, gamma, beta, w1, b1, w2, b2, *, eps=1e-5):
    """Convenience one-shot wrapper (prefer ffn_prepare + ffn_apply to cache padding)."""
    return ffn_apply(ffn_prepare(gamma, beta, w1, b1, w2, b2, eps=eps), x)


# ----------------------------------------------------------------------------
# Pure-JAX reference + demo
# ----------------------------------------------------------------------------

def ffn_reference(x, gamma, beta, w1, b1, w2, b2, *, eps=1e-5):
    xf = x.astype(jnp.float32)
    mean = jnp.mean(xf, axis=-1, keepdims=True)
    var = jnp.mean((xf - mean) ** 2, axis=-1, keepdims=True)
    xn = (xf - mean) * jax.lax.rsqrt(var + eps) * gamma + beta
    h = xn @ w1 + b1
    h = h * jax.nn.sigmoid(h)
    y = h @ w2 + b2
    return y.astype(x.dtype)


if __name__ == "__main__":
    key = jax.random.PRNGKey(0)

    # Small shapes consistent with FFN(dim, hidden_dim) applied to a
    # (batch, seq, dim) spectrogram.
    #   0: dim < 128 (exercises the feature-padding path)
    #   1: lane-aligned dim (zero wrapper padding, >=2 row-grid steps)
    #   2: rows not divisible by the row tile (partial last block)
    configs = [
        (2, 8, 32, 64),
        (2, 64, 128, 256),
        (3, 5, 48, 96),
    ]

    for idx, (batch, seq, dim, hidden) in enumerate(configs):
        k = jax.random.fold_in(key, idx)
        kx, kg, kb, kw1, kb1, kw2, kb2 = jax.random.split(k, 7)

        x = jax.random.normal(kx, (batch, seq, dim), dtype=jnp.float32)
        gamma = 1.0 + 0.1 * jax.random.normal(kg, (dim,), dtype=jnp.float32)
        beta = 0.1 * jax.random.normal(kb, (dim,), dtype=jnp.float32)
        w1 = jax.random.normal(kw1, (dim, hidden), dtype=jnp.float32) * 0.05
        b1 = jax.random.normal(kb1, (hidden,), dtype=jnp.float32) * 0.05
        w2 = jax.random.normal(kw2, (hidden, dim), dtype=jnp.float32) * 0.05
        b2 = jax.random.normal(kb2, (dim,), dtype=jnp.float32) * 0.05

        params = ffn_prepare(gamma, beta, w1, b1, w2, b2)   # pad once, reuse
        out = ffn_apply(params, x)
        out = jax.block_until_ready(out)

        ref = ffn_reference(x, gamma, beta, w1, b1, w2, b2)
        assert out.shape == x.shape and out.dtype == x.dtype
        assert jnp.allclose(out, ref, atol=2e-5, rtol=2e-5), \
            f"mismatch vs reference (config {idx})"

    print("KERNEL_OK")
</pallas_src>

<mosaic_0001>
module attributes {stable_mosaic.version = 11 : i64} {
  func.func @k(%arg0: i32, %arg1: memref<8x128xf32, #tpu.memory_space<vmem>>, %arg2: memref<8x128xf32, #tpu.memory_space<vmem>>, %arg3: memref<8x128xf32, #tpu.memory_space<vmem>>) attributes {dimension_semantics = [#tpu.dimension_semantics<arbitrary>], iteration_bounds = array<i64: 1>, scalar_prefetch = 0 : i64, scratch_operands = 0 : i64, tpu.core_type = #tpu.core_type<tc>, window_params = [{pipeline_mode = #tpu.pipeline_mode<synchronous>, transform_indices = @transform_0, window_bounds = array<i64: 8, 128>}, {transform_indices = @transform_1, window_bounds = array<i64: 8, 128>}, {transform_indices = @transform_2, window_bounds = array<i64: 8, 128>}]} {
    %c0 = arith.constant 0 : index
    %c0_0 = arith.constant 0 : index
    %0 = vector.load %arg2[%c0, %c0_0] : memref<8x128xf32, #tpu.memory_space<vmem>>, vector<8x128xf32>
    %c0_1 = arith.constant 0 : index
    %c0_2 = arith.constant 0 : index
    %1 = vector.load %arg1[%c0_1, %c0_2] : memref<8x128xf32, #tpu.memory_space<vmem>>, vector<8x128xf32>
    %2 = arith.addf %0, %1 : vector<8x128xf32>
    %c0_3 = arith.constant 0 : index
    %c0_4 = arith.constant 0 : index
    %3 = vector.load %arg3[%c0_3, %c0_4] : memref<8x128xf32, #tpu.memory_space<vmem>>, vector<8x128xf32>
    tpu.vector_store %arg3[%c0_3, %c0_4], %2 {strides = array<i32>} : memref<8x128xf32, #tpu.memory_space<vmem>>, vector<8x128xf32>,
    return
  }
  func.func @transform_0(%arg0: i32) -> (i32, i32) {
    %c0_i32 = arith.constant 0 : i32
    %c0_i32_0 = arith.constant 0 : i32
    %c0_i32_1 = arith.constant 0 : i32
    return %c0_i32, %c0_i32_0 : i32, i32
  }
  func.func @transform_1(%arg0: i32) -> (i32, i32) {
    %c0_i32 = arith.constant 0 : i32
    %c0_i32_0 = arith.constant 0 : i32
    return %arg0, %c0_i32 : i32, i32
  }
  func.func @transform_2(%arg0: i32) -> (i32, i32) {
    %c0_i32 = arith.constant 0 : i32
    %c0_i32_0 = arith.constant 0 : i32
    return %arg0, %c0_i32 : i32, i32
  }
}

module attributes {stable_mosaic.version = 11 : i64} {
  func.func @ffn_kernel(%arg0: i32, %arg1: i32, %arg2: memref<8x128xf32, #tpu.memory_space<vmem>>, %arg3: memref<1x128xf32, #tpu.memory_space<vmem>>, %arg4: memref<1x128xf32, #tpu.memory_space<vmem>>, %arg5: memref<128x128xf32, #tpu.memory_space<vmem>>, %arg6: memref<1x128xf32, #tpu.memory_space<vmem>>, %arg7: memref<128x128xf32, #tpu.memory_space<vmem>>, %arg8: memref<1x128xf32, #tpu.memory_space<vmem>>, %arg9: memref<8x128xf32, #tpu.memory_space<vmem>>, %arg10: memref<8x128xf32, #tpu.memory_space<vmem>>, %arg11: memref<8x128xf32, #tpu.memory_space<vmem>>) attributes {dimension_semantics = [#tpu.dimension_semantics<parallel>, #tpu.dimension_semantics<arbitrary>], iteration_bounds = array<i64: 2, 1>, scalar_prefetch = 0 : i64, scratch_operands = 2 : i64, tpu.core_type = #tpu.core_type<tc>, window_params = [{transform_indices = @transform_0, window_bounds = array<i64: 8, 128>}, {pipeline_mode = #tpu.pipeline_mode<synchronous>, transform_indices = @transform_1, window_bounds = array<i64: 1, 128>}, {pipeline_mode = #tpu.pipeline_mode<synchronous>, transform_indices = @transform_2, window_bounds = array<i64: 1, 128>}, {pipeline_mode = #tpu.pipeline_mode<synchronous>, transform_indices = @transform_3, window_bounds = array<i64: 128, 128>}, {pipeline_mode = #tpu.pipeline_mode<synchronous>, transform_indices = @transform_4, window_bounds = array<i64: 1, 128>}, {pipeline_mode = #tpu.pipeline_mode<synchronous>, transform_indices = @transform_5, window_bounds = array<i64: 128, 128>}, {pipeline_mode = #tpu.pipeline_mode<synchronous>, transform_indices = @transform_6, window_bounds = array<i64: 1, 128>}, {transform_indices = @transform_7, window_bounds = array<i64: 8, 128>}]} {
    %c0_i32 = arith.constant 0 : i32
    %0 = arith.cmpi eq, %arg1, %c0_i32 : i32
    %1 = arith.extui %0 : i1 to i32
    %c0_i32_0 = arith.constant 0 : i32
    %2 = arith.cmpi ne, %1, %c0_i32_0 : i32
    scf.if %2 {
      %c0_16 = arith.constant 0 : index
      %c0_17 = arith.constant 0 : index
      %23 = vector.load %arg2[%c0_16, %c0_17] : memref<8x128xf32, #tpu.memory_space<vmem>>, vector<8x128xf32>
      %cst_18 = arith.constant dense<0.000000e+00> : vector<8xf32>
      %24 = vector.multi_reduction <add>, %23, %cst_18 [1] : vector<8x128xf32> to vector<8xf32>
      %25 = vector.shape_cast %24 : vector<8xf32> to vector<8x1xf32>
      %cst_19 = arith.constant 3.125000e-02 : f32
      %26 = vector.broadcast %cst_19 : f32 to vector<8x1xf32>
      %27 = arith.mulf %25, %26 : vector<8x1xf32>
      %28 = vector.broadcast %27 : vector<8x1xf32> to vector<8x128xf32>
      %29 = arith.subf %23, %28 : vector<8x128xf32>
      %30 = tpu.iota {dimensions = array<i32: 1>} : vector<8x128xi32>
      %c32_i32 = arith.constant 32 : i32
      %31 = vector.broadcast %c32_i32 : i32 to vector<8x128xi32>
      %32 = arith.cmpi slt, %30, %31 : vector<8x128xi32>
      %cst_20 = arith.constant 0.000000e+00 : f32
      %33 = vector.broadcast %cst_20 : f32 to vector<8x128xf32>
      %34 = arith.select %32, %29, %33 : vector<8x128xi1>, vector<8x128xf32>
      %35 = arith.mulf %34, %34 : vector<8x128xf32>
      %cst_21 = arith.constant dense<0.000000e+00> : vector<8xf32>
      %36 = vector.multi_reduction <add>, %35, %cst_21 [1] : vector<8x128xf32> to vector<8xf32>
      %37 = vector.shape_cast %36 : vector<8xf32> to vector<8x1xf32>
      %cst_22 = arith.constant 3.125000e-02 : f32
      %38 = vector.broadcast %cst_22 : f32 to vector<8x1xf32>
      %39 = arith.mulf %37, %38 : vector<8x1xf32>
      %cst_23 = arith.constant 9.99999974E-6 : f32
      %40 = vector.broadcast %cst_23 : f32 to vector<8x1xf32>
      %41 = arith.addf %39, %40 : vector<8x1xf32>
      %42 = math.rsqrt %41 : vector<8x1xf32>
      %c0_24 = arith.constant 0 : index
      %c0_25 = arith.constant 0 : index
      %43 = vector.load %arg3[%c0_24, %c0_25] : memref<1x128xf32, #tpu.memory_space<vmem>>, vector<1x128xf32>
      %c0_26 = arith.constant 0 : index
      %c0_27 = arith.constant 0 : index
      %44 = vector.load %arg4[%c0_26, %c0_27] : memref<1x128xf32, #tpu.memory_space<vmem>>, vector<1x128xf32>
      %45 = vector.broadcast %42 : vector<8x1xf32> to vector<8x128xf32>
      %46 = arith.mulf %34, %45 : vector<8x128xf32>
      %47 = vector.broadcast %43 : vector<1x128xf32> to vector<8x128xf32>
      %48 = arith.mulf %46, %47 : vector<8x128xf32>
      %49 = vector.broadcast %44 : vector<1x128xf32> to vector<8x128xf32>
      %50 = arith.addf %48, %49 : vector<8x128xf32>
      %c0_28 = arith.constant 0 : index
      %c0_29 = arith.constant 0 : index
      %51 = vector.load %arg11[%c0_28, %c0_29] : memref<8x128xf32, #tpu.memory_space<vmem>>, vector<8x128xf32>
      tpu.vector_store %arg11[%c0_28, %c0_29], %50 {strides = array<i32>} : memref<8x128xf32, #tpu.memory_space<vmem>>, vector<8x128xf32>,
      %cst_30 = arith.constant 0.000000e+00 : f32
      %52 = vector.broadcast %cst_30 : f32 to vector<8x128xf32>
      %c0_31 = arith.constant 0 : index
      %c0_32 = arith.constant 0 : index
      %53 = vector.load %arg10[%c0_31, %c0_32] : memref<8x128xf32, #tpu.memory_space<vmem>>, vector<8x128xf32>
      tpu.vector_store %arg10[%c0_31, %c0_32], %52 {strides = array<i32>} : memref<8x128xf32, #tpu.memory_space<vmem>>, vector<8x128xf32>,
    } else {
    }
    %c0 = arith.constant 0 : index
    %c0_1 = arith.constant 0 : index
    %3 = vector.load %arg11[%c0, %c0_1] : memref<8x128xf32, #tpu.memory_space<vmem>>, vector<8x128xf32>
    %c0_2 = arith.constant 0 : index
    %c0_3 = arith.constant 0 : index
    %4 = vector.load %arg5[%c0_2, %c0_3] : memref<128x128xf32, #tpu.memory_space<vmem>>, vector<128x128xf32>
    %cst = arith.constant dense<0.000000e+00> : vector<8x128xf32>
    %5 = tpu.matmul %3, %4, %cst {dimension_numbers = #tpu.dot_dimension_numbers<[1], [0], [0], [1], [0, 0, 1, 1], [], []>} : vector<8x128xf32>, vector<128x128xf32>, vector<8x128xf32> -> vector<8x128xf32>
    %c0_4 = arith.constant 0 : index
    %c0_5 = arith.constant 0 : index
    %6 = vector.load %arg6[%c0_4, %c0_5] : memref<1x128xf32, #tpu.memory_space<vmem>>, vector<1x128xf32>
    %7 = vector.broadcast %6 : vector<1x128xf32> to vector<8x128xf32>
    %8 = arith.addf %5, %7 : vector<8x128xf32>
    %9 = arith.negf %8 : vector<8x128xf32>
    %10 = math.exp %9 : vector<8x128xf32>
    %cst_6 = arith.constant 1.000000e+00 : f32
    %11 = vector.broadcast %cst_6 : f32 to vector<8x128xf32>
    %12 = arith.addf %11, %10 : vector<8x128xf32>
    %13 = arith.divf %11, %12 : vector<8x128xf32>
    %14 = arith.mulf %8, %13 : vector<8x128xf32>
    %c0_7 = arith.constant 0 : index
    %c0_8 = arith.constant 0 : index
    %15 = vector.load %arg10[%c0_7, %c0_8] : memref<8x128xf32, #tpu.memory_space<vmem>>, vector<8x128xf32>
    %c0_9 = arith.constant 0 : index
    %c0_10 = arith.constant 0 : index
    %16 = vector.load %arg7[%c0_9, %c0_10] : memref<128x128xf32, #tpu.memory_space<vmem>>, vector<128x128xf32>
    %cst_11 = arith.constant dense<0.000000e+00> : vector<8x128xf32>
    %17 = tpu.matmul %14, %16, %cst_11 {dimension_numbers = #tpu.dot_dimension_numbers<[1], [0], [0], [1], [0, 0, 1, 1], [], []>} : vector<8x128xf32>, vector<128x128xf32>, vector<8x128xf32> -> vector<8x128xf32>
    %18 = arith.addf %15, %17 : vector<8x128xf32>
    %c0_12 = arith.constant 0 : index
    %c0_13 = arith.constant 0 : index
    %19 = vector.load %arg10[%c0_12, %c0_13] : memref<8x128xf32, #tpu.memory_space<vmem>>, vector<8x128xf32>
    tpu.vector_store %arg10[%c0_12, %c0_13], %18 {strides = array<i32>} : memref<8x128xf32, #tpu.memory_space<vmem>>, vector<8x128xf32>,
    %c0_i32_14 = arith.constant 0 : i32
    %20 = arith.cmpi eq, %arg1, %c0_i32_14 : i32
    %21 = arith.extui %20 : i1 to i32
    %c0_i32_15 = arith.constant 0 : i32
    %22 = arith.cmpi ne, %21, %c0_i32_15 : i32
    scf.if %22 {
      %c0_16 = arith.constant 0 : index
      %c0_17 = arith.constant 0 : index
      %23 = vector.load %arg10[%c0_16, %c0_17] : memref<8x128xf32, #tpu.memory_space<vmem>>, vector<8x128xf32>
      %c0_18 = arith.constant 0 : index
      %c0_19 = arith.constant 0 : index
      %24 = vector.load %arg8[%c0_18, %c0_19] : memref<1x128xf32, #tpu.memory_space<vmem>>, vector<1x128xf32>
      %25 = vector.broadcast %24 : vector<1x128xf32> to vector<8x128xf32>
      %26 = arith.addf %23, %25 : vector<8x128xf32>
      %c0_20 = arith.constant 0 : index
      %c0_21 = arith.constant 0 : index
      %27 = vector.load %arg9[%c0_20, %c0_21] : memref<8x128xf32, #tpu.memory_space<vmem>>, vector<8x128xf32>
      tpu.vector_store %arg9[%c0_20, %c0_21], %26 {strides = array<i32>} : memref<8x128xf32, #tpu.memory_space<vmem>>, vector<8x128xf32>,
    } else {
    }
    return
  }
  func.func @transform_0(%arg0: i32, %arg1: i32) -> (i32, i32) {
    %c0_i32 = arith.constant 0 : i32
    %c0_i32_0 = arith.constant 0 : i32
    return %arg0, %c0_i32 : i32, i32
  }
  func.func @transform_1(%arg0: i32, %arg1: i32) -> (i32, i32) {
    %c0_i32 = arith.constant 0 : i32
    %c0_i32_0 = arith.constant 0 : i32
    %c0_i32_1 = arith.constant 0 : i32
    return %c0_i32, %c0_i32_0 : i32, i32
  }
  func.func @transform_2(%arg0: i32, %arg1: i32) -> (i32, i32) {
    %c0_i32 = arith.constant 0 : i32
    %c0_i32_0 = arith.constant 0 : i32
    %c0_i32_1 = arith.constant 0 : i32
    return %c0_i32, %c0_i32_0 : i32, i32
  }
  func.func @transform_3(%arg0: i32, %arg1: i32) -> (i32, i32) {
    %c0_i32 = arith.constant 0 : i32
    %c0_i32_0 = arith.constant 0 : i32
    %c0_i32_1 = arith.constant 0 : i32
    return %c0_i32, %c0_i32_0 : i32, i32
  }
  func.func @transform_4(%arg0: i32, %arg1: i32) -> (i32, i32) {
    %c0_i32 = arith.constant 0 : i32
    %c0_i32_0 = arith.constant 0 : i32
    %c0_i32_1 = arith.constant 0 : i32
    return %c0_i32, %c0_i32_0 : i32, i32
  }
  func.func @transform_5(%arg0: i32, %arg1: i32) -> (i32, i32) {
    %c0_i32 = arith.constant 0 : i32
    %c0_i32_0 = arith.constant 0 : i32
    %c0_i32_1 = arith.constant 0 : i32
    return %c0_i32, %c0_i32_0 : i32, i32
  }
  func.func @transform_6(%arg0: i32, %arg1: i32) -> (i32, i32) {
    %c0_i32 = arith.constant 0 : i32
    %c0_i32_0 = arith.constant 0 : i32
    %c0_i32_1 = arith.constant 0 : i32
    return %c0_i32, %c0_i32_0 : i32, i32
  }
  func.func @transform_7(%arg0: i32, %arg1: i32) -> (i32, i32) {
    %c0_i32 = arith.constant 0 : i32
    %c0_i32_0 = arith.constant 0 : i32
    return %arg0, %c0_i32 : i32, i32
  }
}

</mosaic_0001>

<llo_original>
// kernel: tpu_custom_call.1
$region0: #{tpu_custom_call.1}
  #allocation0 [shape = 'u32[]', space=smem, size = 0x4, offset = 0x4, fixed_abs, tag = 'smem constant byte address 0x4 - core index']
  #allocation1 [shape = 'u32[72,128]{1,0:T(1,128)}', space=vmem, size = 0x9000, scoped, tag = 'internal scratch']
  %s0 = inlined_call_operand.hbm [shape: f32[8,128], index: 0, kind: input, shape index: {}]
  %s1 = inlined_call_operand.hbm [shape: f32[8,128], index: 1, kind: input, shape index: {}]
  %s2 = inlined_call_operand.hbm [shape: f32[8,128], index: 2, kind: output, shape index: {}]
  %s3 = sld [smem:[#allocation0]]
  $region26: #{tpu_custom_call.1} parent=0
    _
  %s5 = ssub.s32 1, %s3
  %s6 = scalar_select 0, %s5, %s3
  $region1: #{tpu_custom_call.1} parent=0
    #allocation2 [shape = 'u8[4096]{0}', space=vmem, size = 0x1000, scoped, tag = 'input window, operand 0, single buffered']
    #allocation3 [shape = 's32[1]{0}', space=sflag, size = 0x4, scoped, tag = 'scoped memory for tpu_custom_call.1']
    #allocation4 [shape = 's32[1]{0}', space=sflag, size = 0x4, scoped, tag = 'scoped memory for tpu_custom_call.1']
    #allocation5 [shape = 'u8[4096]{0}', space=vmem, size = 0x1000, scoped, tag = 'input window, operand 1, single buffered']
    #allocation6 [shape = 's32[1]{0}', space=sflag, size = 0x4, scoped, tag = 'scoped memory for tpu_custom_call.1']
    #allocation7 [shape = 'u8[4096]{0}', space=vmem, size = 0x1000, scoped, tag = 'output window, operand 0, single buffered']
    %7 = vsyncpa [#allocation3], 0
    %8 = vsyncpa [#allocation6], 0
    %9 = vsyncpa [#allocation4], 0
    // Predicated region
    $region2: #{tpu_custom_call.1} parent=1 // pred_check
      _
    $region3: #{tpu_custom_call.1} parent=1 // pred_check_branch
      %11 = sbr.rel (0) target = $region5
    $region4: #{tpu_custom_call.1} parent=1 // pred_region
      %13 = vsyncadd [#allocation3], 0
      %s15 = sshll.u32 %s0, 4
      %s16 = int_to_ptr.hbm [resolvable:$true] %s15
      %s17 = sshll.u32 [#allocation2], 4
      %s18 = int_to_ptr.vmem [resolvable:$true] %s17
      %20 = dma.hbm_to_vmem [thread:$0]  %s16, 128, %s18, [#allocation3]
    $region5: #{tpu_custom_call.1} parent=1 // pred_fallthru
      _
    // Predicated region
    $region6: #{tpu_custom_call.1} parent=1 // pred_check
      _
    $region7: #{tpu_custom_call.1} parent=1 // pred_check_branch
      %22 = sbr.rel (0) target = $region9
    $region8: #{tpu_custom_call.1} parent=1 // pred_region
      %24 = vsyncadd [#allocation6], 0
      %s26 = sshll.u32 %s1, 4
      %s27 = int_to_ptr.hbm [resolvable:$true] %s26
      %s28 = sshll.u32 [#allocation5], 4
      %s29 = int_to_ptr.vmem [resolvable:$true] %s28
      %31 = dma.hbm_to_vmem [thread:$0]  %s27, 128, %s29, [#allocation6]
    $region9: #{tpu_custom_call.1} parent=1 // pred_fallthru
      _
    // Predicated region
    $region10: #{tpu_custom_call.1} parent=1 // pred_check
      _
    $region11: #{tpu_custom_call.1} parent=1 // pred_check_branch
      %33 = sbr.rel (0) target = $region13
    $region12: #{tpu_custom_call.1} parent=1 // pred_region
      %35 = dma.done [#allocation3], 128
    $region13: #{tpu_custom_call.1} parent=1 // pred_fallthru
      _
    // Predicated region
    $region14: #{tpu_custom_call.1} parent=1 // pred_check
      _
    $region15: #{tpu_custom_call.1} parent=1 // pred_check_branch
      %37 = sbr.rel (0) target = $region17
    $region16: #{tpu_custom_call.1} parent=1 // pred_region
      %39 = dma.done [#allocation6], 128
    $region17: #{tpu_custom_call.1} parent=1 // pred_fallthru
      _
    %v40 = vld [vmem:[#allocation5] sm:$0xff]
    %v41 = vld [vmem:[#allocation2] sm:$0xff]
    %v42 = vadd.f32 %v40, %v41
    %43 = vst [vmem:[#allocation7] sm:$0xff] %v42
    // Predicated region
    $region18: #{tpu_custom_call.1} parent=1 // pred_check
      _
    $region19: #{tpu_custom_call.1} parent=1 // pred_check_branch
      %45 = sbr.rel (0) target = $region21
    $region20: #{tpu_custom_call.1} parent=1 // pred_region
      %47 = vsyncadd [#allocation4], 0
      %s49 = sshll.u32 [#allocation7], 4
      %s50 = int_to_ptr.vmem [resolvable:$true] %s49
      %s51 = sshll.u32 %s2, 4
      %s52 = int_to_ptr.hbm [resolvable:$true] %s51
      %54 = dma.vmem_to_hbm [thread:$0]  %s50, 128, %s52, [#allocation4]
    $region21: #{tpu_custom_call.1} parent=1 // pred_fallthru
      _
    // Predicated region
    $region22: #{tpu_custom_call.1} parent=1 // pred_check
      _
    $region23: #{tpu_custom_call.1} parent=1 // pred_check_branch
      %56 = sbr.rel (0) target = $region25
    $region24: #{tpu_custom_call.1} parent=1 // pred_region
      %58 = dma.done [#allocation4], 128
    $region25: #{tpu_custom_call.1} parent=1 // pred_fallthru
      _
    %59 = vsyncpa [#allocation3], 1
    %60 = vsyncpa [#allocation6], 1
    %61 = vsyncpa [#allocation4], 1

// kernel: tpu_custom_call.1
$region0: #{tpu_custom_call.1}
  #allocation0 [shape = 'u32[]', space=smem, size = 0x4, offset = 0x4, fixed_abs, tag = 'smem constant byte address 0x4 - core index']
  #allocation1 [shape = 'u32[72,128]{1,0:T(1,128)}', space=vmem, size = 0x9000, scoped, tag = 'internal scratch']
  #allocation2 [shape = 'f32[8,128]{1,0:T(8,128)}', space=vmem, size = 0x1000, scoped, tag = 'scratch operand']
  #allocation3 [shape = 'f32[8,128]{1,0:T(8,128)}', space=vmem, size = 0x1000, scoped, tag = 'scratch operand']
  %s0 = inlined_call_operand.hbm [shape: f32[16,128], index: 0, kind: input, shape index: {}]
  %s1 = inlined_call_operand.hbm [shape: f32[1,128], index: 1, kind: input, shape index: {}]
  %s2 = inlined_call_operand.vmem [shape: f32[1,128], index: 2, kind: input, shape index: {}]
  %s3 = inlined_call_operand.hbm [shape: f32[128,128], index: 3, kind: input, shape index: {}]
  %s4 = inlined_call_operand.vmem [shape: f32[1,128], index: 4, kind: input, shape index: {}]
  %s5 = inlined_call_operand.hbm [shape: f32[128,128], index: 5, kind: input, shape index: {}]
  %s6 = inlined_call_operand.vmem [shape: f32[1,128], index: 6, kind: input, shape index: {}]
  %s7 = inlined_call_operand.hbm [shape: f32[16,128], index: 7, kind: output, shape index: {}]
  %s8 = sld [smem:[#allocation0]]
  $region85: #{tpu_custom_call.1} parent=0
    _
  %s10 = ssub.s32 1, %s8
  %s11 = scalar_select 0, %s10, %s8
  $region1: #{tpu_custom_call.1} parent=0
    #allocation4 [shape = 'u8[8192]{0}', space=vmem, size = 0x2000, scoped, tag = 'input window, operand 0']
    #allocation5 [shape = 's32[2]{0}', space=sflag, size = 0x8, scoped, tag = 'scoped memory for tpu_custom_call.1']
    #allocation6 [shape = 's32[2]{0}', space=sflag, size = 0x8, scoped, tag = 'scoped memory for tpu_custom_call.1']
    #allocation7 [shape = 'u8[512]{0}', space=vmem, size = 0x400, scoped, tag = 'input window, operand 1, single buffered']
    #allocation8 [shape = 's32[1]{0}', space=sflag, size = 0x4, scoped, tag = 'scoped memory for tpu_custom_call.1']
    #allocation9 [shape = 'u8[65536]{0}', space=vmem, size = 0x10000, scoped, tag = 'input window, operand 3, single buffered']
    #allocation10 [shape = 'u8[65536]{0}', space=vmem, size = 0x10000, scoped, tag = 'input window, operand 5, single buffered']
    #allocation11 [shape = 's32[1]{0}', space=sflag, size = 0x4, scoped, tag = 'scoped memory for tpu_custom_call.1']
    #allocation12 [shape = 'u8[8192]{0}', space=vmem, size = 0x2000, scoped, tag = 'output window, operand 0']
    %12 = vsyncpa [#allocation5], 0
    %s13 = scalar_lea.sflag [#allocation5], 1
    %14 = vsyncpa %s13, 0
    %15 = vsyncpa [#allocation8], 0
    %16 = vsyncpa [#allocation11], 0
    %17 = vsyncpa [#allocation6], 0
    %s18 = scalar_lea.sflag [#allocation6], 1
    %19 = vsyncpa %s18, 0
    loop: start=0, step=1, limit=4
    $region2: #{tpu_custom_call.1} parent=1 // loop_pre_header
      _
    $region3: #{tpu_custom_call.1} parent=1 // loop_header
      %s21 = sphi 0, %s25
      %p22 = scmp.ge.s32.totalorder %s21, 4
      %s28 = sphi 0, %s40
      %s29 = sphi 0, %s36
      %s30 = sphi 0, %s28
      %s31 = sphi 0, %s29
      %s32 = sphi 0, %s30
      %s33 = sphi 0, %s31
      %s43 = sphi 0, %s45
      %s46 = sphi 0, %s43
      %s47 = sphi 0, %s46
      %s63 = sphi 0, %s47
      %s67 = sphi 0, %s67
      %s69 = sphi 0, %s67
      %s70 = sphi 0, %s69
      %s84 = sphi 0, %s70
      %s88 = sphi 0, %s88
      %s90 = sphi 0, %s88
      %s91 = sphi 0, %s90
      %s105 = sphi 0, %s91
      %s109 = sphi 0, %s109
      %s111 = sphi 0, %s109
      %s112 = sphi 0, %s111
      %s126 = sphi 0, %s112
      %s130 = sphi 0, %s130
      %s132 = sphi 0, %s130
      %s133 = sphi 0, %s132
      %s147 = sphi 0, %s133
      %s151 = sphi 0, %s151
      %s153 = sphi 0, %s151
      %s154 = sphi 0, %s153
      %s168 = sphi 0, %s154
      %s172 = sphi 0, %s172
      %s174 = sphi 0, %s172
      %s175 = sphi 0, %s174
      %s189 = sphi 0, %s175
      %s195 = sphi 0, %s197
      %s198 = sphi 0, %s195
      %s199 = sphi 0, %s198
      %s215 = sphi 0, %s199
    $region4: #{tpu_custom_call.1} parent=1 // loop_header_branch
      %24 = sbr.rel (%p22) target = $region8
    $region5: #{tpu_custom_call.1} parent=1 // loop_body
      %s26 = ssub.s32 %s21, 1
      %s27 = ssub.s32 %s21, 2
      %s34 = sadd.s32 1, %s29
      %p35 = scmp.ge.s32.totalorder %s34, 1
      %s36 = scalar_select %p35, 0, %s34
      %s37 = sadd.s32 1, %s28
      %s38 = scalar_select %p35, %s37, %s28
      %p39 = scmp.ge.s32.totalorder %s38, 2
      %s40 = scalar_select %p39, 0, %s38
      %s41 = ssub.s32 %s28, %s40
      %p42 = scmp.eq.s32.totalorder %s41, 0
      %s44 = sadd.s32 %s43, 1
      %s45 = scalar_select %p42, %s43, %s44
      %p48 = pneg %p42
      %p49 = scmp.eq.s32.totalorder %s21, 1
      %p50 = por %p48, %p49
      %p51 = scmp.ne.s32.totalorder %s43, %s46
      %p52 = scmp.eq.s32.totalorder %s21, 0
      %p53 = por %p51, %p52
      %p54 = scmp.ne.s32.totalorder %s43, %s46
      %p55 = scmp.eq.s32.totalorder %s26, 1
      %p56 = por %p54, %p55
      %p57 = scmp.ne.s32.totalorder %s46, %s47
      %p58 = scmp.eq.s32.totalorder %s26, 0
      %p59 = por %p57, %p58
      %p60 = scmp.ne.s32.totalorder %s46, %s47
      %p61 = scmp.eq.s32.totalorder %s27, 1
      %p62 = por %p60, %p61
      %p64 = scmp.ne.s32.totalorder %s47, %s63
      %p65 = scmp.eq.s32.totalorder %s27, 0
      %p66 = por %p64, %p65
      %s68 = sadd.s32 %s67, 1
      %p71 = scmp.eq.s32.totalorder %s21, 1
      %p72 = scmp.ne.s32.totalorder %s67, %s69
      %p73 = scmp.eq.s32.totalorder %s21, 0
      %p74 = por %p72, %p73
      %p75 = scmp.ne.s32.totalorder %s67, %s69
      %p76 = scmp.eq.s32.totalorder %s26, 1
      %p77 = por %p75, %p76
      %p78 = scmp.ne.s32.totalorder %s69, %s70
      %p79 = scmp.eq.s32.totalorder %s26, 0
      %p80 = por %p78, %p79
      %p81 = scmp.ne.s32.totalorder %s69, %s70
      %p82 = scmp.eq.s32.totalorder %s27, 1
      %p83 = por %p81, %p82
      %p85 = scmp.ne.s32.totalorder %s70, %s84
      %p86 = scmp.eq.s32.totalorder %s27, 0
      %p87 = por %p85, %p86
      %s89 = sadd.s32 %s88, 1
      %p92 = scmp.eq.s32.totalorder %s21, 1
      %p93 = scmp.ne.s32.totalorder %s88, %s90
      %p94 = scmp.eq.s32.totalorder %s21, 0
      %p95 = por %p93, %p94
      %p96 = scmp.ne.s32.totalorder %s88, %s90
      %p97 = scmp.eq.s32.totalorder %s26, 1
      %p98 = por %p96, %p97
      %p99 = scmp.ne.s32.totalorder %s90, %s91
      %p100 = scmp.eq.s32.totalorder %s26, 0
      %p101 = por %p99, %p100
      %p102 = scmp.ne.s32.totalorder %s90, %s91
      %p103 = scmp.eq.s32.totalorder %s27, 1
      %p104 = por %p102, %p103
      %p106 = scmp.ne.s32.totalorder %s91, %s105
      %p107 = scmp.eq.s32.totalorder %s27, 0
      %p108 = por %p106, %p107
      %s110 = sadd.s32 %s109, 1
      %p113 = scmp.eq.s32.totalorder %s21, 1
      %p114 = scmp.ne.s32.totalorder %s109, %s111
      %p115 = scmp.eq.s32.totalorder %s21, 0
      %p116 = por %p114, %p115
      %p117 = scmp.ne.s32.totalorder %s109, %s111
      %p118 = scmp.eq.s32.totalorder %s26, 1
      %p119 = por %p117, %p118
      %p120 = scmp.ne.s32.totalorder %s111, %s112
      %p121 = scmp.eq.s32.totalorder %s26, 0
      %p122 = por %p120, %p121
      %p123 = scmp.ne.s32.totalorder %s111, %s112
      %p124 = scmp.eq.s32.totalorder %s27, 1
      %p125 = por %p123, %p124
      %p127 = scmp.ne.s32.totalorder %s112, %s126
      %p128 = scmp.eq.s32.totalorder %s27, 0
      %p129 = por %p127, %p128
      %s131 = sadd.s32 %s130, 1
      %p134 = scmp.eq.s32.totalorder %s21, 1
      %p135 = scmp.ne.s32.totalorder %s130, %s132
      %p136 = scmp.eq.s32.totalorder %s21, 0
      %p137 = por %p135, %p136
      %p138 = scmp.ne.s32.totalorder %s130, %s132
      %p139 = scmp.eq.s32.totalorder %s26, 1
      %p140 = por %p138, %p139
      %p141 = scmp.ne.s32.totalorder %s132, %s133
      %p142 = scmp.eq.s32.totalorder %s26, 0
      %p143 = por %p141, %p142
      %p144 = scmp.ne.s32.totalorder %s132, %s133
      %p145 = scmp.eq.s32.totalorder %s27, 1
      %p146 = por %p144, %p145
      %p148 = scmp.ne.s32.totalorder %s133, %s147
      %p149 = scmp.eq.s32.totalorder %s27, 0
      %p150 = por %p148, %p149
      %s152 = sadd.s32 %s151, 1
      %p155 = scmp.eq.s32.totalorder %s21, 1
      %p156 = scmp.ne.s32.totalorder %s151, %s153
      %p157 = scmp.eq.s32.totalorder %s21, 0
      %p158 = por %p156, %p157
      %p159 = scmp.ne.s32.totalorder %s151, %s153
      %p160 = scmp.eq.s32.totalorder %s26, 1
      %p161 = por %p159, %p160
      %p162 = scmp.ne.s32.totalorder %s153, %s154
      %p163 = scmp.eq.s32.totalorder %s26, 0
      %p164 = por %p162, %p163
      %p165 = scmp.ne.s32.totalorder %s153, %s154
      %p166 = scmp.eq.s32.totalorder %s27, 1
      %p167 = por %p165, %p166
      %p169 = scmp.ne.s32.totalorder %s154, %s168
      %p170 = scmp.eq.s32.totalorder %s27, 0
      %p171 = por %p169, %p170
      %s173 = sadd.s32 %s172, 1
      %p176 = scmp.eq.s32.totalorder %s21, 1
      %p177 = scmp.ne.s32.totalorder %s172, %s174
      %p178 = scmp.eq.s32.totalorder %s21, 0
      %p179 = por %p177, %p178
      %p180 = scmp.ne.s32.totalorder %s172, %s174
      %p181 = scmp.eq.s32.totalorder %s26, 1
      %p182 = por %p180, %p181
      %p183 = scmp.ne.s32.totalorder %s174, %s175
      %p184 = scmp.eq.s32.totalorder %s26, 0
      %p185 = por %p183, %p184
      %p186 = scmp.ne.s32.totalorder %s174, %s175
      %p187 = scmp.eq.s32.totalorder %s27, 1
      %p188 = por %p186, %p187
      %p190 = scmp.ne.s32.totalorder %s175, %s189
      %p191 = scmp.eq.s32.totalorder %s27, 0
      %p192 = por %p190, %p191
      %s193 = ssub.s32 %s28, %s40
      %p194 = scmp.eq.s32.totalorder %s193, 0
      %s196 = sadd.s32 %s195, 1
      %s197 = scalar_select %p194, %s195, %s196
      %p200 = pneg %p194
      %p201 = scmp.eq.s32.totalorder %s21, 1
      %p202 = por %p200, %p201
      %p203 = scmp.ne.s32.totalorder %s195, %s198
      %p204 = scmp.eq.s32.totalorder %s21, 0
      %p205 = por %p203, %p204
      %p206 = scmp.ne.s32.totalorder %s195, %s198
      %p207 = scmp.eq.s32.totalorder %s26, 1
      %p208 = por %p206, %p207
      %p209 = scmp.ne.s32.totalorder %s198, %s199
      %p210 = scmp.eq.s32.totalorder %s26, 0
      %p211 = por %p209, %p210
      %p212 = scmp.ne.s32.totalorder %s198, %s199
      %p213 = scmp.eq.s32.totalorder %s27, 1
      %p214 = por %p212, %p213
      %p216 = scmp.ne.s32.totalorder %s199, %s215
      %p217 = scmp.eq.s32.totalorder %s27, 0
      %p218 = por %p216, %p217
      %p219 = scmp.le.s32.totalorder 1, %s21
      %p220 = scmp.lt.s32.totalorder %s21, 3
      %p221 = pnand %p219, %p220
      %p222 = pneg %p221
      // Predicated region
      $region9: #{tpu_custom_call.1} parent=5 // pred_check
        _
      $region10: #{tpu_custom_call.1} parent=5 // pred_check_branch
        %224 = sbr.rel (%p221) target = $region12
      $region11: #{tpu_custom_call.1} parent=5 // pred_region
        %s225 = ssub.s32 %s21, 1
        // Predicated region
        $region13: #{tpu_custom_call.1} parent=11 // pred_check
          %p226 = pneg %p80
        $region14: #{tpu_custom_call.1} parent=11 // pred_check_branch
          %228 = sbr.rel (%p226) target = $region16
        $region15: #{tpu_custom_call.1} parent=11 // pred_region
          %230 = vsyncadd [#allocation8], 0
          %s232 = sshll.u32 %s1, 4
          %s233 = int_to_ptr.hbm [resolvable:$true] %s232
          %s234 = sshll.u32 [#allocation7], 4
          %s235 = int_to_ptr.vmem [resolvable:$true] %s234
          %237 = dma.hbm_to_vmem [thread:$0]  %s233, 16, %s235, [#allocation8]
        $region16: #{tpu_custom_call.1} parent=11 // pred_fallthru
          _
        // Predicated region
        $region17: #{tpu_custom_call.1} parent=11 // pred_check
          %p238 = pneg %p101
        $region18: #{tpu_custom_call.1} parent=11 // pred_check_branch
          %240 = sbr.rel (%p238) target = $region20
        $region19: #{tpu_custom_call.1} parent=11 // pred_region
          _
        $region20: #{tpu_custom_call.1} parent=11 // pred_fallthru
          _
        // Predicated region
        $region21: #{tpu_custom_call.1} parent=11 // pred_check
          %p241 = pneg %p122
        $region22: #{tpu_custom_call.1} parent=11 // pred_check_branch
          %243 = sbr.rel (%p241) target = $region24
        $region23: #{tpu_custom_call.1} parent=11 // pred_region
          %245 = vsyncadd [#allocation8], 0
          %s246 = sshll.u32 %s3, 4
          %s247 = int_to_ptr.hbm [resolvable:$true] %s246
          %s248 = sshll.u32 [#allocation9], 4
          %s249 = int_to_ptr.vmem [resolvable:$true] %s248
          %254 = dma.hbm_to_vmem [thread:$0]  %s247, 2048, %s249, [#allocation8], 128, 128, 8
        $region24: #{tpu_custom_call.1} parent=11 // pred_fallthru
          _
        // Predicated region
        $region25: #{tpu_custom_call.1} parent=11 // pred_check
          %p255 = pneg %p143
        $region26: #{tpu_custom_call.1} parent=11 // pred_check_branch
          %257 = sbr.rel (%p255) target = $region28
        $region27: #{tpu_custom_call.1} parent=11 // pred_region
          _
        $region28: #{tpu_custom_call.1} parent=11 // pred_fallthru
          _
        // Predicated region
        $region29: #{tpu_custom_call.1} parent=11 // pred_check
          %p258 = pneg %p164
        $region30: #{tpu_custom_call.1} parent=11 // pred_check_branch
          %260 = sbr.rel (%p258) target = $region32
        $region31: #{tpu_custom_call.1} parent=11 // pred_region
          %262 = vsyncadd [#allocation11], 0
          %s263 = sshll.u32 %s5, 4
          %s264 = int_to_ptr.hbm [resolvable:$true] %s263
          %s265 = sshll.u32 [#allocation10], 4
          %s266 = int_to_ptr.vmem [resolvable:$true] %s265
          %271 = dma.hbm_to_vmem [thread:$0]  %s264, 2048, %s266, [#allocation11], 128, 128, 8
        $region32: #{tpu_custom_call.1} parent=11 // pred_fallthru
          _
        // Predicated region
        $region33: #{tpu_custom_call.1} parent=11 // pred_check
          %p272 = pneg %p185
        $region34: #{tpu_custom_call.1} parent=11 // pred_check_branch
          %274 = sbr.rel (%p272) target = $region36
        $region35: #{tpu_custom_call.1} parent=11 // pred_region
          _
        $region36: #{tpu_custom_call.1} parent=11 // pred_fallthru
          _
      $region12: #{tpu_custom_call.1} parent=5 // pred_fallthru
        _
      %p275 = scmp.lt.s32.totalorder %s21, 2
      // Predicated region
      $region37: #{tpu_custom_call.1} parent=5 // pred_check
        %p276 = pneg %p275
      $region38: #{tpu_custom_call.1} parent=5 // pred_check_branch
        %278 = sbr.rel (%p276) target = $region40
      $region39: #{tpu_custom_call.1} parent=5 // pred_region
        // Predicated region
        $region41: #{tpu_custom_call.1} parent=39 // pred_check
          %p279 = pneg %p53
        $region42: #{tpu_custom_call.1} parent=39 // pred_check_branch
          %281 = sbr.rel (%p279) target = $region44
        $region43: #{tpu_custom_call.1} parent=39 // pred_region
          %s282 = sand.u32 %s43, 1
          %s283 = scalar_lea.sflag [#allocation5], %s282
          %s284 = sand.u32 %s43, 1
          %s285 = smul.addr %s284, 8
          %s286 = scalar_lea.vmem [#allocation4], %s285
          %288 = vsyncadd %s283, 0
          %s289 = smul.addr %s28, 8
          %s290 = scalar_lea.hbm %s0, %s289
          %s292 = sshll.u32 %s290, 4
          %s293 = int_to_ptr.hbm [resolvable:$true] %s292
          %s294 = sshll.u32 %s286, 4
          %s295 = int_to_ptr.vmem [resolvable:$true] %s294
          %297 = dma.hbm_to_vmem [thread:$0]  %s293, 128, %s295, %s283
        $region44: #{tpu_custom_call.1} parent=39 // pred_fallthru
          _
      $region40: #{tpu_custom_call.1} parent=5 // pred_fallthru
        _
      %p298 = scmp.le.s32.totalorder 1, %s21
      %p299 = scmp.lt.s32.totalorder %s21, 3
      %p300 = pnand %p298, %p299
      %p301 = pneg %p300
      // Predicated region
      $region45: #{tpu_custom_call.1} parent=5 // pred_check
        _
      $region46: #{tpu_custom_call.1} parent=5 // pred_check_branch
        %303 = sbr.rel (%p300) target = $region48
      $region47: #{tpu_custom_call.1} parent=5 // pred_region
        %s304 = ssub.s32 %s21, 1
        %s305 = sand.u32 %s46, 1
        %s306 = scalar_lea.sflag [#allocation5], %s305
        %s307 = sand.u32 %s46, 1
        %s308 = smul.addr %s307, 8
        %s309 = scalar_lea.vmem [#allocation4], %s308
        // Predicated region
        $region49: #{tpu_custom_call.1} parent=47 // pred_check
          %p310 = pneg %p59
        $region50: #{tpu_custom_call.1} parent=47 // pred_check_branch
          %312 = sbr.rel (%p310) target = $region52
        $region51: #{tpu_custom_call.1} parent=47 // pred_region
          %314 = dma.done %s306, 128
        $region52: #{tpu_custom_call.1} parent=47 // pred_fallthru
          _
        // Predicated region
        $region53: #{tpu_custom_call.1} parent=47 // pred_check
          %p315 = pneg %p80
        $region54: #{tpu_custom_call.1} parent=47 // pred_check_branch
          %317 = sbr.rel (%p315) target = $region56
        $region55: #{tpu_custom_call.1} parent=47 // pred_region
          %319 = dma.done [#allocation8], 16
        $region56: #{tpu_custom_call.1} parent=47 // pred_fallthru
          _
        // Predicated region
        $region57: #{tpu_custom_call.1} parent=47 // pred_check
          %p320 = pneg %p122
        $region58: #{tpu_custom_call.1} parent=47 // pred_check_branch
          %322 = sbr.rel (%p320) target = $region60
        $region59: #{tpu_custom_call.1} parent=47 // pred_region
          %324 = dma.done [#allocation8], 2048
        $region60: #{tpu_custom_call.1} parent=47 // pred_fallthru
          _
        // Predicated region
        $region61: #{tpu_custom_call.1} parent=47 // pred_check
          %p325 = pneg %p164
        $region62: #{tpu_custom_call.1} parent=47 // pred_check_branch
          %327 = sbr.rel (%p325) target = $region64
        $region63: #{tpu_custom_call.1} parent=47 // pred_region
          %329 = dma.done [#allocation11], 2048
        $region64: #{tpu_custom_call.1} parent=47 // pred_fallthru
          _
        %s330 = sand.u32 %s46, 1
        %s331 = scalar_lea.sflag [#allocation5], %s330
        %s332 = sand.u32 %s46, 1
        %s333 = smul.addr %s332, 8
        %s334 = scalar_lea.vmem [#allocation4], %s333
        %p335 = pneg %p59
        %p336 = pneg %p56
        %p337 = pneg %p80
        %p338 = pneg %p77
        %p339 = pneg %p101
        %p340 = pneg %p98
        %p341 = pneg %p122
        %p342 = pneg %p119
        %p343 = pneg %p143
        %p344 = pneg %p140
        %p345 = pneg %p164
        %p346 = pneg %p161
        %p347 = pneg %p185
        %p348 = pneg %p182
        %p349 = pneg %p211
        %p350 = pneg %p208
        %s351 = sand.u32 %s198, 1
        %s352 = scalar_lea.sflag [#allocation6], %s351
        %s353 = sand.u32 %s198, 1
        %s354 = smul.addr %s353, 8
        %s355 = scalar_lea.vmem [#allocation12], %s354
        %p356 = scmp.eq.s32.totalorder %s31, 0
        // Predicated region
        $region65: #{tpu_custom_call.1} parent=47 // pred_check
          %p357 = pneg %p356
        $region66: #{tpu_custom_call.1} parent=47 // pred_check_branch
          %359 = sbr.rel (%p357) target = $region68
        $region67: #{tpu_custom_call.1} parent=47 // pred_region
          %v360 = vld [vmem:[%s309] sm:$0xff]
          %361 = vadd.xlane.f32.xlu0 %v360
          %v362 = vpop.xlane.xlu0 %361
          %v363 = vmul.f32 %v362, 0.03125
          %v364 = vsub.f32 %v360, %v363
          %v365 = vlaneseq
          %v366 = vand.u32 %v365, 127
          %vm367 = vcmp.lt.s32.totalorder %v366, 32
          %v368 = vsel %vm367, %v364, 0.0
          %v369 = vmul.f32 %v368, %v368
          %370 = vadd.xlane.f32.xlu0 %v369
          %v371 = vpop.xlane.xlu0 %370
          %v372 = vmul.f32 %v371, 0.03125
          %v373 = vadd.f32 %v372, 1e-05
          %v374 = vrsqrt.pop %v373
          %v375 = vmul.f32 %v374, %v373
          %v376 = vmul.f32 %v375, %v374
          %v377 = vmul.f32 0.5, %v376
          %v378 = vsub.f32 1.5, %v377
          %v379 = vmul.f32 %v374, %v378
          %vm380 = vweird.f32 %v373
          %vm381 = vweird.f32 %v374
          %vm382 = vmor %vm380, %vm381
          %v383 = vsel %vm382, %v374, %v379
          %v384 = vld [vmem:[#allocation7] sm:$0x1]
          %v385 = vld [vmem:[%s2] sm:$0x1]
          %v386 = vmul.f32 %v368, %v383
          %v388 = vperm.slane %v384, 0
          %v390 = vmul.f32 %v386, %v388
          %v392 = vperm.slane %v385, 0
          %v394 = vadd.f32 %v390, %v392
          %395 = vst [vmem:[#allocation3] sm:$0xff] %v394
          %396 = vst [vmem:[#allocation2] sm:$0xff] 0.0
        $region68: #{tpu_custom_call.1} parent=47 // pred_fallthru
          _
        %v397 = vld [vmem:[#allocation3] sm:$0xff]
        %v398 = vld [vmem:[#allocation9] sm:$0xff]
        %v399 = vld [vmem:[#allocation9 + $0x8] sm:$0xff]
        %v400 = vld [vmem:[#allocation9 + $0x10] sm:$0xff]
        %v401 = vld [vmem:[#allocation9 + $0x18] sm:$0xff]
        %v402 = vld [vmem:[#allocation9 + $0x20] sm:$0xff]
        %v403 = vld [vmem:[#allocation9 + $0x28] sm:$0xff]
        %v404 = vld [vmem:[#allocation9 + $0x30] sm:$0xff]
        %v405 = vld [vmem:[#allocation9 + $0x38] sm:$0xff]
        %v406 = vld [vmem:[#allocation9 + $0x40] sm:$0xff]
        %v407 = vld [vmem:[#allocation9 + $0x48] sm:$0xff]
        %v408 = vld [vmem:[#allocation9 + $0x50] sm:$0xff]
        %v409 = vld [vmem:[#allocation9 + $0x58] sm:$0xff]
        %v410 = vld [vmem:[#allocation9 + $0x60] sm:$0xff]
        %v411 = vld [vmem:[#allocation9 + $0x68] sm:$0xff]
        %v412 = vld [vmem:[#allocation9 + $0x70] sm:$0xff]
        %v413 = vld [vmem:[#allocation9 + $0x78] sm:$0xff]
        %v414 = vld [vmem:[%s4] sm:$0x1]
        %v416 = vperm.slane %v414, 0
        %418 = vmatpush.msra.mxu0 %v413
        %419 = vmatpush.msra.mxu0 %v412
        %420 = vmatpush.msra.mxu0 %v411
        %421 = vmatpush.msra.mxu0 %v410
        %422 = vmatpush.msra.mxu0 %v409
        %423 = vmatpush.msra.mxu0 %v408
        %424 = vmatpush.msra.mxu0 %v407
        %425 = vmatpush.msra.mxu0 %v406
        %426 = vmatpush.msra.mxu0 %v405
        %427 = vmatpush.msra.mxu0 %v404
        %428 = vmatpush.msra.mxu0 %v403
        %429 = vmatpush.msra.mxu0 %v402
        %430 = vmatpush.msra.mxu0 %v401
        %431 = vmatpush.msra.mxu0 %v400
        %432 = vmatpush.msra.mxu0 %v399
        %433 = vmatpush.msra.mxu0 %v398
        %434 = vmatmul.f32.gmra.mxu0 %v397
        %v435 = vpop.f32.mrf.mxu0
        %v436 = vadd.f32 %v416, %v435
        %437 = vdwg.mxu0
        %v438 = vxor.u32 %v436, 2147483648
        %v439 = vmul.f32 %v438, 1.442695
        %v440 = vpow.pop %v439
        %v441 = vadd.f32 %v440, 1.0
        %v442 = vrcp.pop %v441
        %v443 = vmul.f32 %v441, %v442
        %v444 = vsub.f32 1.0, %v443
        %v445 = vmul.f32 %v442, %v444
        %v446 = vadd.f32 %v442, %v445
        %vm447 = vweird.f32 %v441
        %vm448 = vweird.f32 %v442
        %vm449 = vmor %vm447, %vm448
        %v450 = vsel %vm449, %v442, %v446
        %v451 = vand.u32 2147483647, %v441
        %vm452 = vcmp.eq.f32.partialorder %v451, 8.507059e+37
        %v453 = vand.u32 %v441, 2147483648
        %v454 = vor.u32 1.1754944e-38, %v453
        %v455 = vsel %vm452, %v454, %v450
        %v456 = vmul.f32 1.0, %v455
        %v457 = vmul.f32 %v436, %v456
        %v458 = vld [vmem:[#allocation2] sm:$0xff]
        %v459 = vld [vmem:[#allocation10] sm:$0xff]
        %v460 = vld [vmem:[#allocation10 + $0x8] sm:$0xff]
        %v461 = vld [vmem:[#allocation10 + $0x10] sm:$0xff]
        %v462 = vld [vmem:[#allocation10 + $0x18] sm:$0xff]
        %v463 = vld [vmem:[#allocation10 + $0x20] sm:$0xff]
        %v464 = vld [vmem:[#allocation10 + $0x28] sm:$0xff]
        %v465 = vld [vmem:[#allocation10 + $0x30] sm:$0xff]
        %v466 = vld [vmem:[#allocation10 + $0x38] sm:$0xff]
        %v467 = vld [vmem:[#allocation10 + $0x40] sm:$0xff]
        %v468 = vld [vmem:[#allocation10 + $0x48] sm:$0xff]
        %v469 = vld [vmem:[#allocation10 + $0x50] sm:$0xff]
        %v470 = vld [vmem:[#allocation10 + $0x58] sm:$0xff]
        %v471 = vld [vmem:[#allocation10 + $0x60] sm:$0xff]
        %v472 = vld [vmem:[#allocation10 + $0x68] sm:$0xff]
        %v473 = vld [vmem:[#allocation10 + $0x70] sm:$0xff]
        %v474 = vld [vmem:[#allocation10 + $0x78] sm:$0xff]
        %475 = vmatpush.msra.mxu0 %v474
        %476 = vmatpush.msra.mxu0 %v473
        %477 = vmatpush.msra.mxu0 %v472
        %478 = vmatpush.msra.mxu0 %v471
        %479 = vmatpush.msra.mxu0 %v470
        %480 = vmatpush.msra.mxu0 %v469
        %481 = vmatpush.msra.mxu0 %v468
        %482 = vmatpush.msra.mxu0 %v467
        %483 = vmatpush.msra.mxu0 %v466
        %484 = vmatpush.msra.mxu0 %v465
        %485 = vmatpush.msra.mxu0 %v464
        %486 = vmatpush.msra.mxu0 %v463
        %487 = vmatpush.msra.mxu0 %v462
        %488 = vmatpush.msra.mxu0 %v461
        %489 = vmatpush.msra.mxu0 %v460
        %490 = vmatpush.msra.mxu0 %v459
        %491 = vmatmul.f32.gmra.mxu0 %v457
        %v492 = vpop.f32.mrf.mxu0
        %v493 = vadd.f32 0.0, %v492
        %494 = vdwg.mxu0
        %v495 = vadd.f32 %v458, %v493
        %496 = vst [vmem:[#allocation2] sm:$0xff] %v495
        // Predicated region
        $region69: #{tpu_custom_call.1} parent=47 // pred_check
          %p497 = pneg %p356
        $region70: #{tpu_custom_call.1} parent=47 // pred_check_branch
          %499 = sbr.rel (%p497) target = $region72
        $region71: #{tpu_custom_call.1} parent=47 // pred_region
          %v500 = vld [vmem:[#allocation2] sm:$0xff]
          %v501 = vld [vmem:[%s6] sm:$0x1]
          %v503 = vperm.slane %v501, 0
          %v505 = vadd.f32 %v500, %v503
          %506 = vst [vmem:[%s355] sm:$0xff] %v505
        $region72: #{tpu_custom_call.1} parent=47 // pred_fallthru
          _
        %s507 = sand.u32 %s198, 1
        %s508 = scalar_lea.sflag [#allocation6], %s507
        %s509 = sand.u32 %s198, 1
        %s510 = smul.addr %s509, 8
        %s511 = scalar_lea.vmem [#allocation12], %s510
        // Predicated region
        $region73: #{tpu_custom_call.1} parent=47 // pred_check
          %p512 = pneg %p208
        $region74: #{tpu_custom_call.1} parent=47 // pred_check_branch
          %514 = sbr.rel (%p512) target = $region76
        $region75: #{tpu_custom_call.1} parent=47 // pred_region
          %516 = vsyncadd %s508, 0
          %s517 = smul.addr %s30, 8
          %s518 = scalar_lea.hbm %s7, %s517
          %s520 = sshll.u32 %s511, 4
          %s521 = int_to_ptr.vmem [resolvable:$true] %s520
          %s522 = sshll.u32 %s518, 4
          %s523 = int_to_ptr.hbm [resolvable:$true] %s522
          %525 = dma.vmem_to_hbm [thread:$0]  %s521, 128, %s523, %s508
        $region76: #{tpu_custom_call.1} parent=47 // pred_fallthru
          _
      $region48: #{tpu_custom_call.1} parent=5 // pred_fallthru
        _
      %p526 = scmp.le.s32.totalorder 2, %s21
      // Predicated region
      $region77: #{tpu_custom_call.1} parent=5 // pred_check
        %p527 = pneg %p526
      $region78: #{tpu_custom_call.1} parent=5 // pred_check_branch
        %529 = sbr.rel (%p527) target = $region80
      $region79: #{tpu_custom_call.1} parent=5 // pred_region
        %s530 = ssub.s32 %s21, 2
        // Predicated region
        $region81: #{tpu_custom_call.1} parent=79 // pred_check
          %p531 = pneg %p214
        $region82: #{tpu_custom_call.1} parent=79 // pred_check_branch
          %533 = sbr.rel (%p531) target = $region84
        $region83: #{tpu_custom_call.1} parent=79 // pred_region
          %s534 = sand.u32 %s199, 1
          %s535 = scalar_lea.sflag [#allocation6], %s534
          %s536 = sand.u32 %s199, 1
          %s537 = smul.addr %s536, 8
          %s538 = scalar_lea.vmem [#allocation12], %s537
          %540 = dma.done %s535, 128
        $region84: #{tpu_custom_call.1} parent=79 // pred_fallthru
          _
      $region80: #{tpu_custom_call.1} parent=5 // pred_fallthru
        _
    $region6: #{tpu_custom_call.1} parent=1 // loop_footer
      %s25 = sadd.s32 1, %s21
    $region7: #{tpu_custom_call.1} parent=1 // loop_footer_branch
      %20 = sbr.rel target = $region3
    $region8: #{tpu_custom_call.1} parent=1 // loop_exit
      _
    %541 = vsyncpa [#allocation5], 1
    %s542 = scalar_lea.sflag [#allocation5], 1
    %543 = vsyncpa %s542, 1
    %544 = vsyncpa [#allocation8], 1
    %545 = vsyncpa [#allocation11], 1
    %546 = vsyncpa [#allocation6], 1
    %s547 = scalar_lea.sflag [#allocation6], 1
    %548 = vsyncpa %s547, 1

</llo_original>
